<compile_context>
chip_gen: v5e
topology: v5e:2x2
jax: 0.10.0
libtpu: 0.0.40
codegen_flags: <defaults>
</compile_context>

<pallas_src>
import functools

import jax
import jax.numpy as jnp
from jax.experimental import pallas as pl
from jax.experimental.pallas import tpu as pltpu


def _cdiv(a, b):
    return -(-a // b)


# ---------------------------------------------------------------------------
# Hardware heuristics (best effort; affect only tiling choices, never results).
# ---------------------------------------------------------------------------
def _chip_info():
    vmem_cap = None
    try:
        vmem_cap = int(pltpu.get_tpu_info().vmem_capacity_bytes)
    except Exception:
        pass
    kind = ""
    try:
        kind = (getattr(jax.devices()[0], "device_kind", "") or "").lower()
    except Exception:
        pass
    num_tc = 1
    if "v7" in kind:
        num_tc = 2
        vmem_cap = min(vmem_cap or (64 << 20), 64 << 20)   # 64 MiB per TC on v7x
    elif "v5p" in kind or "v4" in kind or kind.strip().endswith("v5"):
        num_tc = 2                                          # megacore chips
    if vmem_cap is None:
        vmem_cap = 64 << 20                                 # conservative default
    return vmem_cap, num_tc


# ---------------------------------------------------------------------------
# Kernel bodies
# ---------------------------------------------------------------------------
def _excitation(avg, mx, w1t, b1, w2t, b2):
    """avg/mx: [R, C] f32 rows. One stacked MLP pass -> sigmoid(avg_out + max_out)."""
    nb = avg.shape[0]
    stacked = jnp.concatenate([avg, mx], axis=0)                           # [2R, C]
    h = jnp.dot(stacked, w1t, preferred_element_type=jnp.float32) + b1     # [2R, Cr]
    h = jnp.maximum(h, 0.0)
    e = jnp.dot(h, w2t, preferred_element_type=jnp.float32) + b2           # [2R, C]
    return jax.nn.sigmoid(e[:nb] + e[nb:])                                 # [R, C]


def _fused_kernel(x_ref, w1t_ref, b1_ref, w2t_ref, b2_ref, o_ref, *, inv_hw):
    # x block: [Nb, C, HW] in native NCHW layout (HW on lanes).
    x = x_ref[...]
    avg = jnp.sum(x, axis=2, dtype=jnp.float32) * inv_hw        # [Nb, C]
    mx = jnp.max(x, axis=2).astype(jnp.float32)                 # [Nb, C]
    att = _excitation(avg, mx, w1t_ref[...], b1_ref[...], w2t_ref[...], b2_ref[...])
    att = att.astype(o_ref.dtype)                               # [Nb, C]
    # Re-read the already VMEM-resident tile for the scale phase so the multi-MiB
    # block value does not stay live across the MLP (avoids spills/scratch copies).
    o_ref[...] = (att[:, :, None] * x_ref[...]).astype(o_ref.dtype)


def _pool_kernel(x_ref, sum_ref, max_ref, *, hw_total, hw_tile, need_mask):
    h = pl.program_id(1)

    @pl.when(h == 0)
    def _init():
        sum_ref[...] = jnp.zeros_like(sum_ref)
        max_ref[...] = jnp.full_like(max_ref, -jnp.inf)

    x = x_ref[...]                                              # [1, C, hw_tile]
    if need_mask:
        pos = h * hw_tile + jax.lax.broadcasted_iota(jnp.int32, x.shape, 2)
        valid = pos < hw_total
        xs = jnp.where(valid, x, jnp.zeros((), x.dtype))
        xm = jnp.where(valid, x, jnp.array(-jnp.inf, x.dtype))
    else:
        xs, xm = x, x
    sum_ref[...] += jnp.sum(xs, axis=2, dtype=jnp.float32).reshape(sum_ref.shape)
    max_ref[...] = jnp.maximum(
        max_ref[...], jnp.max(xm, axis=2).astype(jnp.float32).reshape(max_ref.shape))


def _scale_kernel(sum_ref, max_ref, w1t_ref, b1_ref, w2t_ref, b2_ref, x_ref, o_ref,
                  *, inv_hw):
    c = sum_ref.shape[-1]
    avg = sum_ref[...].reshape(1, c) * inv_hw                   # [1, C]
    mx = max_ref[...].reshape(1, c)                             # [1, C]
    att = _excitation(avg, mx, w1t_ref[...], b1_ref[...], w2t_ref[...], b2_ref[...])
    att = att.astype(o_ref.dtype)                               # [1, C]
    o_ref[...] = (att[:, :, None] * x_ref[...]).astype(o_ref.dtype)


# ---------------------------------------------------------------------------
# Wrapper
# ---------------------------------------------------------------------------
def channel_attention(x_nchw, w1, b1, w2, b2, *, block_budget_bytes=None):
    """x: [N, C, H, W]; w1: [Cr, C]; b1: [Cr]; w2: [C, Cr]; b2: [C]."""
    N, C, H, W = x_nchw.shape
    Cr = w1.shape[0]
    HW = H * W

    x_flat = x_nchw.reshape(N, C, HW)               # native layout, no transposes
    itemsize = jnp.dtype(x_flat.dtype).itemsize
    per_image_bytes = C * HW * itemsize

    vmem_cap, num_tc = _chip_info()
    if block_budget_bytes is None:
        # ~16 MiB blocks on 128 MiB chips (v5e/v6e), ~8 MiB on 64 MiB v7x.
        block_budget_bytes = max(2 << 20, min(16 << 20, vmem_cap // 8))

    # Lane-dense excitation operands (row-vector matmuls).
    w1t = jnp.transpose(w1).astype(jnp.float32)     # [C, Cr]
    w2t = jnp.transpose(w2).astype(jnp.float32)     # [Cr, C]
    b1r = b1.reshape(1, Cr).astype(jnp.float32)
    b2r = b2.reshape(1, C).astype(jnp.float32)
    weights = (w1t, b1r, w2t, b2r)
    weight_bytes = 4 * (C * Cr + Cr + Cr * C + C)
    inv_hw = float(1.0 / HW)

    def vmem_limit_for(block_bytes):
        # 2x(in + out) double buffers + resident weights + slack, clamped per chip.
        need = 4 * block_bytes + weight_bytes + (2 << 20)
        return int(min(max(need, 32 << 20), vmem_cap - (8 << 20)))

    if per_image_bytes <= block_budget_bytes:
        # ---------------- Fused single-pass path ----------------
        n_blk = int(max(1, min(N, block_budget_bytes // per_image_bytes)))
        steps = _cdiv(N, n_blk)
        if num_tc > 1 and N > 1:
            # Keep the grid a multiple of the core count (>= 2*cores when N allows)
            # so both TensorCores stream; no-op on single-TC v5e/v6e.
            min_steps = min(N, 2 * num_tc)
            while n_blk > 1 and (steps % num_tc != 0 or steps < min_steps):
                n_blk -= 1
                steps = _cdiv(N, n_blk)
        block_bytes = n_blk * per_image_bytes

        kernel = functools.partial(_fused_kernel, inv_hw=inv_hw)
        out = pl.pallas_call(
            kernel,
            out_shape=jax.ShapeDtypeStruct(x_flat.shape, x_flat.dtype),
            grid_spec=pltpu.PrefetchScalarGridSpec(
                num_scalar_prefetch=0,
                grid=(steps,),
                in_specs=[
                    pl.BlockSpec((n_blk, C, HW), lambda n: (n, 0, 0)),   # x
                    pl.BlockSpec((C, Cr), lambda n: (0, 0)),             # w1^T
                    pl.BlockSpec((1, Cr), lambda n: (0, 0)),             # b1
                    pl.BlockSpec((Cr, C), lambda n: (0, 0)),             # w2^T
                    pl.BlockSpec((1, C), lambda n: (0, 0)),              # b2
                ],
                out_specs=pl.BlockSpec((n_blk, C, HW), lambda n: (n, 0, 0)),
            ),
            compiler_params=pltpu.CompilerParams(
                dimension_semantics=("parallel",),
                vmem_limit_bytes=vmem_limit_for(block_bytes),
            ),
        )(x_flat, *weights)
        return out.reshape(N, C, H, W)

    # ---------------- HW-tiled two-phase path (large feature maps) ----------------
    # TODO(synk): for N==1 small-but-not-tiny images on v7x, a partial-sum pooling
    # variant could also parallelize phase 1 across both cores.
    hw_tile = 128 * max(1, block_budget_bytes // (C * 128 * itemsize))
    hw_tile = int(min(hw_tile, _cdiv(HW, 128) * 128))
    hw_steps = _cdiv(HW, hw_tile)
    need_mask = (HW % hw_tile) != 0
    block_bytes = C * hw_tile * itemsize
    vmem_limit = vmem_limit_for(block_bytes)

    pooled_shape = jax.ShapeDtypeStruct((N, 1, C), jnp.float32)
    pool_kernel = functools.partial(_pool_kernel, hw_total=HW, hw_tile=hw_tile,
                                    need_mask=need_mask)
    sum_pooled, max_pooled = pl.pallas_call(
        pool_kernel,
        out_shape=(pooled_shape, pooled_shape),
        grid_spec=pltpu.PrefetchScalarGridSpec(
            num_scalar_prefetch=0,
            grid=(N, hw_steps),
            in_specs=[pl.BlockSpec((1, C, hw_tile), lambda n, h: (n, 0, h))],
            out_specs=(pl.BlockSpec((1, 1, C), lambda n, h: (n, 0, 0)),
                       pl.BlockSpec((1, 1, C), lambda n, h: (n, 0, 0))),
        ),
        compiler_params=pltpu.CompilerParams(
            dimension_semantics=("parallel", "arbitrary"),
            vmem_limit_bytes=vmem_limit,
        ),
    )(x_flat)

    scale_kernel = functools.partial(_scale_kernel, inv_hw=inv_hw)
    out = pl.pallas_call(
        scale_kernel,
        out_shape=jax.ShapeDtypeStruct(x_flat.shape, x_flat.dtype),
        grid_spec=pltpu.PrefetchScalarGridSpec(
            num_scalar_prefetch=0,
            grid=(N, hw_steps),
            in_specs=[
                pl.BlockSpec((1, 1, C), lambda n, h: (n, 0, 0)),          # pooled sum
                pl.BlockSpec((1, 1, C), lambda n, h: (n, 0, 0)),          # pooled max
                pl.BlockSpec((C, Cr), lambda n, h: (0, 0)),               # w1^T
                pl.BlockSpec((1, Cr), lambda n, h: (0, 0)),               # b1
                pl.BlockSpec((Cr, C), lambda n, h: (0, 0)),               # w2^T
                pl.BlockSpec((1, C), lambda n, h: (0, 0)),                # b2
                pl.BlockSpec((1, C, hw_tile), lambda n, h: (n, 0, h)),    # x
            ],
            out_specs=pl.BlockSpec((1, C, hw_tile), lambda n, h: (n, 0, h)),
        ),
        compiler_params=pltpu.CompilerParams(
            # Attention is recomputed per tile from the tiny pooled vectors, so both
            # axes are independent -> N=1 large images still use both cores on v7x.
            dimension_semantics=("parallel", "parallel"),
            vmem_limit_bytes=vmem_limit,
        ),
    )(sum_pooled, max_pooled, *weights, x_flat)
    return out.reshape(N, C, H, W)


# ---------------------------------------------------------------------------
# Pure-JAX reference (PyTorch forward semantics)
# ---------------------------------------------------------------------------
def _reference(x, w1, b1, w2, b2):
    avg = jnp.mean(x, axis=(2, 3))   # [N, C]
    mx = jnp.max(x, axis=(2, 3))     # [N, C]

    def excite(v):
        h = jnp.maximum(v @ w1.T + b1, 0.0)
        return h @ w2.T + b2

    att = jax.nn.sigmoid(excite(avg) + excite(mx))
    return att[:, :, None, None] * x


if __name__ == "__main__":
    N, C, H, W = 2, 32, 16, 16
    reduction_rate = 16
    Cr = C // reduction_rate   # = 2

    key = jax.random.PRNGKey(0)
    kx, kw1, kb1, kw2, kb2 = jax.random.split(key, 5)
    x = jax.random.normal(kx, (N, C, H, W), dtype=jnp.float32)
    w1 = jax.random.normal(kw1, (Cr, C), dtype=jnp.float32) * 0.1
    b1 = jax.random.normal(kb1, (Cr,), dtype=jnp.float32) * 0.1
    w2 = jax.random.normal(kw2, (C, Cr), dtype=jnp.float32) * 0.1
    b2 = jax.random.normal(kb2, (C,), dtype=jnp.float32) * 0.1

    # 1) Fused single-pass path (default generation-aware block budget).
    out = jax.block_until_ready(channel_attention(x, w1, b1, w2, b2))
    ref = _reference(x, w1, b1, w2, b2)
    assert out.shape == (N, C, H, W)
    assert jnp.allclose(out, ref, atol=1e-5, rtol=1e-5), "fused path mismatch"

    # 2) Fused path with a padded batch tail (odd N, blocks of <=2 images).
    x3 = jax.random.normal(kx, (3, C, H, W), dtype=jnp.float32)
    out3 = jax.block_until_ready(
        channel_attention(x3, w1, b1, w2, b2, block_budget_bytes=2 * C * H * W * 4))
    assert jnp.allclose(out3, _reference(x3, w1, b1, w2, b2), atol=1e-5, rtol=1e-5), \
        "fused batch-tail mismatch"

    # 3) HW-tiled two-phase path (tiny budget forces it; HW divisible by the tile).
    out_t = jax.block_until_ready(
        channel_attention(x, w1, b1, w2, b2, block_budget_bytes=8 * 1024))
    assert jnp.allclose(out_t, ref, atol=1e-5, rtol=1e-5), "two-phase path mismatch"

    # 4) Two-phase path with a masked HW tail (H=W=12 -> HW=144, tile=128).
    xm = jax.random.normal(kx, (N, C, 12, 12), dtype=jnp.float32)
    out_m = jax.block_until_ready(
        channel_attention(xm, w1, b1, w2, b2, block_budget_bytes=8 * 1024))
    assert jnp.allclose(out_m, _reference(xm, w1, b1, w2, b2), atol=1e-5, rtol=1e-5), \
        "two-phase masked-tail mismatch"

    print("KERNEL_OK")
</pallas_src>

<mosaic_0001>
module attributes {stable_mosaic.version = 11 : i64} {
  func.func @_fused_kernel(%arg0: i32, %arg1: memref<2x32x256xf32, #tpu.memory_space<vmem>>, %arg2: memref<32x2xf32, #tpu.memory_space<vmem>>, %arg3: memref<1x2xf32, #tpu.memory_space<vmem>>, %arg4: memref<2x32xf32, #tpu.memory_space<vmem>>, %arg5: memref<1x32xf32, #tpu.memory_space<vmem>>, %arg6: memref<2x32x256xf32, #tpu.memory_space<vmem>>) attributes {dimension_semantics = [#tpu.dimension_semantics<parallel>], iteration_bounds = array<i64: 1>, scalar_prefetch = 0 : i64, scratch_operands = 0 : i64, tpu.core_type = #tpu.core_type<tc>, window_params = [{transform_indices = @transform_0, window_bounds = array<i64: 2, 32, 256>}, {pipeline_mode = #tpu.pipeline_mode<synchronous>, transform_indices = @transform_1, window_bounds = array<i64: 32, 2>}, {pipeline_mode = #tpu.pipeline_mode<synchronous>, transform_indices = @transform_2, window_bounds = array<i64: 1, 2>}, {pipeline_mode = #tpu.pipeline_mode<synchronous>, transform_indices = @transform_3, window_bounds = array<i64: 2, 32>}, {pipeline_mode = #tpu.pipeline_mode<synchronous>, transform_indices = @transform_4, window_bounds = array<i64: 1, 32>}, {transform_indices = @transform_5, window_bounds = array<i64: 2, 32, 256>}]} {
    %c0 = arith.constant 0 : index
    %c0_0 = arith.constant 0 : index
    %c0_1 = arith.constant 0 : index
    %0 = vector.load %arg1[%c0, %c0_0, %c0_1] : memref<2x32x256xf32, #tpu.memory_space<vmem>>, vector<2x32x256xf32>
    %cst = arith.constant dense<0.000000e+00> : vector<2x32xf32>
    %1 = vector.multi_reduction <add>, %0, %cst [2] : vector<2x32x256xf32> to vector<2x32xf32>
    %cst_2 = arith.constant 3.906250e-03 : f32
    %2 = vector.broadcast %cst_2 : f32 to vector<2x32xf32>
    %3 = arith.mulf %1, %2 : vector<2x32xf32>
    %cst_3 = arith.constant dense<0xFF800000> : vector<2x32xf32>
    %4 = vector.multi_reduction <maximumf>, %0, %cst_3 [2] : vector<2x32x256xf32> to vector<2x32xf32>
    %c0_4 = arith.constant 0 : index
    %c0_5 = arith.constant 0 : index
    %5 = vector.load %arg2[%c0_4, %c0_5] : memref<32x2xf32, #tpu.memory_space<vmem>>, vector<32x2xf32>
    %c0_6 = arith.constant 0 : index
    %c0_7 = arith.constant 0 : index
    %6 = vector.load %arg3[%c0_6, %c0_7] : memref<1x2xf32, #tpu.memory_space<vmem>>, vector<1x2xf32>
    %c0_8 = arith.constant 0 : index
    %c0_9 = arith.constant 0 : index
    %7 = vector.load %arg4[%c0_8, %c0_9] : memref<2x32xf32, #tpu.memory_space<vmem>>, vector<2x32xf32>
    %c0_10 = arith.constant 0 : index
    %c0_11 = arith.constant 0 : index
    %8 = vector.load %arg5[%c0_10, %c0_11] : memref<1x32xf32, #tpu.memory_space<vmem>>, vector<1x32xf32>
    %9 = tpu.concatenate %3, %4 in 0 : vector<2x32xf32>, vector<2x32xf32> -> vector<4x32xf32>
    %cst_12 = arith.constant dense<0.000000e+00> : vector<4x2xf32>
    %10 = tpu.matmul %9, %5, %cst_12 {dimension_numbers = #tpu.dot_dimension_numbers<[1], [0], [0], [1], [0, 0, 1, 1], [], []>} : vector<4x32xf32>, vector<32x2xf32>, vector<4x2xf32> -> vector<4x2xf32>
    %11 = vector.broadcast %6 : vector<1x2xf32> to vector<4x2xf32>
    %12 = arith.addf %10, %11 : vector<4x2xf32>
    %cst_13 = arith.constant 0.000000e+00 : f32
    %13 = vector.broadcast %cst_13 : f32 to vector<4x2xf32>
    %14 = arith.maximumf %12, %13 : vector<4x2xf32>
    %cst_14 = arith.constant dense<0.000000e+00> : vector<4x32xf32>
    %15 = tpu.matmul %14, %7, %cst_14 {dimension_numbers = #tpu.dot_dimension_numbers<[1], [0], [0], [1], [0, 0, 1, 1], [], []>} : vector<4x2xf32>, vector<2x32xf32>, vector<4x32xf32> -> vector<4x32xf32>
    %16 = vector.broadcast %8 : vector<1x32xf32> to vector<4x32xf32>
    %17 = arith.addf %15, %16 : vector<4x32xf32>
    %18 = vector.extract_strided_slice %17 {offsets = [0, 0], sizes = [2, 32], strides = [1, 1]} : vector<4x32xf32> to vector<2x32xf32>
    %19 = vector.extract_strided_slice %17 {offsets = [2, 0], sizes = [2, 32], strides = [1, 1]} : vector<4x32xf32> to vector<2x32xf32>
    %20 = arith.addf %18, %19 : vector<2x32xf32>
    %21 = arith.negf %20 : vector<2x32xf32>
    %22 = math.exp %21 : vector<2x32xf32>
    %cst_15 = arith.constant 1.000000e+00 : f32
    %23 = vector.broadcast %cst_15 : f32 to vector<2x32xf32>
    %24 = arith.addf %23, %22 : vector<2x32xf32>
    %25 = arith.divf %23, %24 : vector<2x32xf32>
    %26 = vector.shape_cast %25 : vector<2x32xf32> to vector<2x32x1xf32>
    %c0_16 = arith.constant 0 : index
    %c0_17 = arith.constant 0 : index
    %c0_18 = arith.constant 0 : index
    %27 = vector.load %arg1[%c0_16, %c0_17, %c0_18] : memref<2x32x256xf32, #tpu.memory_space<vmem>>, vector<2x32x256xf32>
    %28 = vector.broadcast %26 : vector<2x32x1xf32> to vector<2x32x256xf32>
    %29 = arith.mulf %28, %27 : vector<2x32x256xf32>
    %c0_19 = arith.constant 0 : index
    %c0_20 = arith.constant 0 : index
    %c0_21 = arith.constant 0 : index
    %30 = vector.load %arg6[%c0_19, %c0_20, %c0_21] : memref<2x32x256xf32, #tpu.memory_space<vmem>>, vector<2x32x256xf32>
    tpu.vector_store %arg6[%c0_19, %c0_20, %c0_21], %29 {strides = array<i32>} : memref<2x32x256xf32, #tpu.memory_space<vmem>>, vector<2x32x256xf32>,
    return
  }
  func.func @transform_0(%arg0: i32) -> (i32, i32, i32) {
    %c0_i32 = arith.constant 0 : i32
    %c0_i32_0 = arith.constant 0 : i32
    %c0_i32_1 = arith.constant 0 : i32
    return %arg0, %c0_i32, %c0_i32_0 : i32, i32, i32
  }
  func.func @transform_1(%arg0: i32) -> (i32, i32) {
    %c0_i32 = arith.constant 0 : i32
    %c0_i32_0 = arith.constant 0 : i32
    %c0_i32_1 = arith.constant 0 : i32
    return %c0_i32, %c0_i32_0 : i32, i32
  }
  func.func @transform_2(%arg0: i32) -> (i32, i32) {
    %c0_i32 = arith.constant 0 : i32
    %c0_i32_0 = arith.constant 0 : i32
    %c0_i32_1 = arith.constant 0 : i32
    return %c0_i32, %c0_i32_0 : i32, i32
  }
  func.func @transform_3(%arg0: i32) -> (i32, i32) {
    %c0_i32 = arith.constant 0 : i32
    %c0_i32_0 = arith.constant 0 : i32
    %c0_i32_1 = arith.constant 0 : i32
    return %c0_i32, %c0_i32_0 : i32, i32
  }
  func.func @transform_4(%arg0: i32) -> (i32, i32) {
    %c0_i32 = arith.constant 0 : i32
    %c0_i32_0 = arith.constant 0 : i32
    %c0_i32_1 = arith.constant 0 : i32
    return %c0_i32, %c0_i32_0 : i32, i32
  }
  func.func @transform_5(%arg0: i32) -> (i32, i32, i32) {
    %c0_i32 = arith.constant 0 : i32
    %c0_i32_0 = arith.constant 0 : i32
    %c0_i32_1 = arith.constant 0 : i32
    return %arg0, %c0_i32, %c0_i32_0 : i32, i32, i32
  }
}

</mosaic_0001>

<llo_original>
// kernel: tpu_custom_call.1
$region0: #{tpu_custom_call.1}
  #allocation0 [shape = 'u32[]', space=smem, size = 0x4, offset = 0x4, fixed_abs, tag = 'smem constant byte address 0x4 - core index']
  #allocation1 [shape = 'u32[72,128]{1,0:T(1,128)}', space=vmem, size = 0x9000, scoped, tag = 'internal scratch']
  %s0 = inlined_call_operand.hbm [shape: f32[2,32,256], index: 0, kind: input, shape index: {}]
  %s1 = inlined_call_operand.vmem [shape: f32[32,2], index: 1, kind: input, shape index: {}]
  %s2 = inlined_call_operand.vmem [shape: f32[1,2], index: 2, kind: input, shape index: {}]
  %s3 = inlined_call_operand.vmem [shape: f32[2,32], index: 3, kind: input, shape index: {}]
  %s4 = inlined_call_operand.vmem [shape: f32[1,32], index: 4, kind: input, shape index: {}]
  %s5 = inlined_call_operand.hbm [shape: f32[2,32,256], index: 5, kind: output, shape index: {}]
  %s6 = sld [smem:[#allocation0]]
  $region34: #{tpu_custom_call.1} parent=0
    _
  %s8 = ssub.s32 1, %s6
  %s9 = scalar_select 0, %s8, %s6
  $region1: #{tpu_custom_call.1} parent=0
    #allocation2 [shape = 'u8[65536]{0}', space=vmem, size = 0x10000, scoped, tag = 'input window, operand 0, single buffered']
    #allocation3 [shape = 's32[1]{0}', space=sflag, size = 0x4, scoped, tag = 'scoped memory for tpu_custom_call.1']
    #allocation4 [shape = 's32[1]{0}', space=sflag, size = 0x4, scoped, tag = 'scoped memory for tpu_custom_call.1']
    #allocation5 [shape = 'u8[65536]{0}', space=vmem, size = 0x10000, scoped, tag = 'output window, operand 0, single buffered']
    %10 = vsyncpa [#allocation3], 0
    %11 = vsyncpa [#allocation4], 0
    // Predicated region
    $region2: #{tpu_custom_call.1} parent=1 // pred_check
      _
    $region3: #{tpu_custom_call.1} parent=1 // pred_check_branch
      %13 = sbr.rel (0) target = $region5
    $region4: #{tpu_custom_call.1} parent=1 // pred_region
      %15 = vsyncadd [#allocation3], 0
      %s16 = sshll.u32 %s0, 4
      %s17 = int_to_ptr.hbm [resolvable:$true] %s16
      %s18 = sshll.u32 [#allocation2], 4
      %s19 = int_to_ptr.vmem [resolvable:$true] %s18
      %24 = dma.hbm_to_vmem [thread:$0]  %s17, 2048, %s19, [#allocation3], 256, 256, 16
    $region5: #{tpu_custom_call.1} parent=1 // pred_fallthru
      _
    // Predicated region
    $region6: #{tpu_custom_call.1} parent=1 // pred_check
      _
    $region7: #{tpu_custom_call.1} parent=1 // pred_check_branch
      %26 = sbr.rel (0) target = $region9
    $region8: #{tpu_custom_call.1} parent=1 // pred_region
      _
    $region9: #{tpu_custom_call.1} parent=1 // pred_fallthru
      _
    // Predicated region
    $region10: #{tpu_custom_call.1} parent=1 // pred_check
      _
    $region11: #{tpu_custom_call.1} parent=1 // pred_check_branch
      %28 = sbr.rel (0) target = $region13
    $region12: #{tpu_custom_call.1} parent=1 // pred_region
      _
    $region13: #{tpu_custom_call.1} parent=1 // pred_fallthru
      _
    // Predicated region
    $region14: #{tpu_custom_call.1} parent=1 // pred_check
      _
    $region15: #{tpu_custom_call.1} parent=1 // pred_check_branch
      %30 = sbr.rel (0) target = $region17
    $region16: #{tpu_custom_call.1} parent=1 // pred_region
      _
    $region17: #{tpu_custom_call.1} parent=1 // pred_fallthru
      _
    // Predicated region
    $region18: #{tpu_custom_call.1} parent=1 // pred_check
      _
    $region19: #{tpu_custom_call.1} parent=1 // pred_check_branch
      %32 = sbr.rel (0) target = $region21
    $region20: #{tpu_custom_call.1} parent=1 // pred_region
      _
    $region21: #{tpu_custom_call.1} parent=1 // pred_fallthru
      _
    // Predicated region
    $region22: #{tpu_custom_call.1} parent=1 // pred_check
      _
    $region23: #{tpu_custom_call.1} parent=1 // pred_check_branch
      %34 = sbr.rel (0) target = $region25
    $region24: #{tpu_custom_call.1} parent=1 // pred_region
      %36 = dma.done [#allocation3], 2048
    $region25: #{tpu_custom_call.1} parent=1 // pred_fallthru
      _
    %v37 = vld [vmem:[#allocation2] sm:$0xff]
    %v38 = vld [vmem:[#allocation2 + $0x8] sm:$0xff]
    %v39 = vld [vmem:[#allocation2 + $0x10] sm:$0xff]
    %v40 = vld [vmem:[#allocation2 + $0x18] sm:$0xff]
    %v41 = vld [vmem:[#allocation2 + $0x20] sm:$0xff]
    %v42 = vld [vmem:[#allocation2 + $0x28] sm:$0xff]
    %v43 = vld [vmem:[#allocation2 + $0x30] sm:$0xff]
    %v44 = vld [vmem:[#allocation2 + $0x38] sm:$0xff]
    %v45 = vld [vmem:[#allocation2 + $0x40] sm:$0xff]
    %v46 = vld [vmem:[#allocation2 + $0x48] sm:$0xff]
    %v47 = vld [vmem:[#allocation2 + $0x50] sm:$0xff]
    %v48 = vld [vmem:[#allocation2 + $0x58] sm:$0xff]
    %v49 = vld [vmem:[#allocation2 + $0x60] sm:$0xff]
    %v50 = vld [vmem:[#allocation2 + $0x68] sm:$0xff]
    %v51 = vld [vmem:[#allocation2 + $0x70] sm:$0xff]
    %v52 = vld [vmem:[#allocation2 + $0x78] sm:$0xff]
    %v53 = vadd.f32 %v37, %v38
    %54 = vadd.xlane.f32.xlu0 %v53
    %v55 = vpop.xlane.xlu0 %54
    %v56 = vadd.f32 %v39, %v40
    %57 = vadd.xlane.f32.xlu0 %v56
    %v58 = vpop.xlane.xlu0 %57
    %v59 = vadd.f32 %v41, %v42
    %60 = vadd.xlane.f32.xlu0 %v59
    %v61 = vpop.xlane.xlu0 %60
    %v62 = vadd.f32 %v43, %v44
    %63 = vadd.xlane.f32.xlu0 %v62
    %v64 = vpop.xlane.xlu0 %63
    %v65 = vadd.f32 %v45, %v46
    %66 = vadd.xlane.f32.xlu0 %v65
    %v67 = vpop.xlane.xlu0 %66
    %v68 = vadd.f32 %v47, %v48
    %69 = vadd.xlane.f32.xlu0 %v68
    %v70 = vpop.xlane.xlu0 %69
    %v71 = vadd.f32 %v49, %v50
    %72 = vadd.xlane.f32.xlu0 %v71
    %v73 = vpop.xlane.xlu0 %72
    %v74 = vadd.f32 %v51, %v52
    %75 = vadd.xlane.f32.xlu0 %v74
    %v76 = vpop.xlane.xlu0 %75
    %v77 = vmul.f32 %v55, 0.00390625
    %v78 = vmul.f32 %v58, 0.00390625
    %v79 = vmul.f32 %v61, 0.00390625
    %v80 = vmul.f32 %v64, 0.00390625
    %v81 = vmul.f32 %v67, 0.00390625
    %v82 = vmul.f32 %v70, 0.00390625
    %v83 = vmul.f32 %v73, 0.00390625
    %v84 = vmul.f32 %v76, 0.00390625
    %v85 = vmax.f32 %v37, %v38
    %86 = vmax.xlane.f32.xlu0 %v85
    %v87 = vpop.xlane.xlu0 %86
    %v88 = vmax.f32 %v39, %v40
    %89 = vmax.xlane.f32.xlu0 %v88
    %v90 = vpop.xlane.xlu0 %89
    %v91 = vmax.f32 %v41, %v42
    %92 = vmax.xlane.f32.xlu0 %v91
    %v93 = vpop.xlane.xlu0 %92
    %v94 = vmax.f32 %v43, %v44
    %95 = vmax.xlane.f32.xlu0 %v94
    %v96 = vpop.xlane.xlu0 %95
    %v97 = vmax.f32 %v45, %v46
    %98 = vmax.xlane.f32.xlu0 %v97
    %v99 = vpop.xlane.xlu0 %98
    %v100 = vmax.f32 %v47, %v48
    %101 = vmax.xlane.f32.xlu0 %v100
    %v102 = vpop.xlane.xlu0 %101
    %v103 = vmax.f32 %v49, %v50
    %104 = vmax.xlane.f32.xlu0 %v103
    %v105 = vpop.xlane.xlu0 %104
    %v106 = vmax.f32 %v51, %v52
    %107 = vmax.xlane.f32.xlu0 %v106
    %v108 = vpop.xlane.xlu0 %107
    %v109 = vld [vmem:[%s1] sm:$0xff]
    %v110 = vld [vmem:[%s1 + $0x8] sm:$0xff]
    %v111 = vld [vmem:[%s1 + $0x10] sm:$0xff]
    %v112 = vld [vmem:[%s1 + $0x18] sm:$0xff]
    %v113 = vld [vmem:[%s2] sm:$0x1]
    %v114 = vld [vmem:[%s3] sm:$0x3]
    %v115 = vld [vmem:[%s4] sm:$0x1]
    %v124 = vlaneseq
    %v125 = vand.u32 %v124, 127
    %v126 = vperm.slane %v77, %v125
    %v127 = vadd.s32 %v125, 4294967288
    %v128 = vperm.slane %v78, %v127
    %vm129 = vcmask 130112
    %v130 = vsel %vm129, %v128, %v126
    %v131 = vadd.s32 %v125, 4294967280
    %v132 = vperm.slane %v79, %v131
    %vm133 = vcmask 195712
    %v134 = vsel %vm133, %v132, %v130
    %v135 = vadd.s32 %v125, 4294967272
    %v136 = vperm.slane %v80, %v135
    %vm137 = vcmask 261312
    %v138 = vsel %vm137, %v136, %v134
    %v139 = vperm.slane %v81, %v125
    %v140 = vperm.slane %v82, %v127
    %v141 = vsel %vm129, %v140, %v139
    %v142 = vperm.slane %v83, %v131
    %v143 = vsel %vm133, %v142, %v141
    %v144 = vperm.slane %v84, %v135
    %v145 = vsel %vm137, %v144, %v143
    %vm146 = vcmask 1041409
    %v147 = vsel %vm146, %v145, %v138
    %v157 = vperm.slane %v87, %v125
    %v158 = vperm.slane %v90, %v127
    %v159 = vsel %vm129, %v158, %v157
    %v160 = vperm.slane %v93, %v131
    %v161 = vsel %vm133, %v160, %v159
    %v162 = vperm.slane %v96, %v135
    %v163 = vsel %vm137, %v162, %v161
    %v164 = vperm.slane %v99, %v125
    %v165 = vperm.slane %v102, %v127
    %v166 = vsel %vm129, %v165, %v164
    %v167 = vperm.slane %v105, %v131
    %v168 = vsel %vm133, %v167, %v166
    %v169 = vperm.slane %v108, %v135
    %v170 = vsel %vm137, %v169, %v168
    %vm171 = vcmask 1043459
    %v172 = vsel %vm171, %v170, %v163
    %vm174 = vcmask 1041408
    %v175 = vsel %vm174, %v147, %v172
    %v177 = vperm.slane %v113, 0
    %vm179 = vcmask 261120
    %v181 = vsel %vm179, %v175, 0
    %183 = vmatpush.msra.mxu0 0.0
    %184 = vmatpush.msra.mxu0 0.0
    %185 = vmatpush.msra.mxu0 0.0
    %186 = vmatpush.msra.mxu0 0.0
    %187 = vmatpush.msra.mxu0 0.0
    %188 = vmatpush.msra.mxu0 0.0
    %189 = vmatpush.msra.mxu0 0.0
    %190 = vmatpush.msra.mxu0 0.0
    %191 = vmatpush.msra.mxu0 0.0
    %192 = vmatpush.msra.mxu0 0.0
    %193 = vmatpush.msra.mxu0 0.0
    %194 = vmatpush.msra.mxu0 0.0
    %195 = vmatpush.msra.mxu0 %v112
    %196 = vmatpush.msra.mxu0 %v111
    %197 = vmatpush.msra.mxu0 %v110
    %198 = vmatpush.msra.mxu0 %v109
    %199 = vmatmul.f32.gmra.mxu0 %v181
    %v200 = vpop.f32.mrf.mxu0
    %v201 = vadd.f32 %v177, %v200
    %202 = vdwg.mxu0
    %v203 = vmax.f32 %v201, 0.0
    %v205 = vperm.slane %v115, 0
    %vm207 = vcmask 15360
    %v209 = vsel %vm207, %v203, 0
    %v212 = vsel %vm174, %v114, 0
    %214 = vmatpush.msra.mxu0 0.0
    %215 = vmatpush.msra.mxu0 0.0
    %216 = vmatpush.msra.mxu0 0.0
    %217 = vmatpush.msra.mxu0 0.0
    %218 = vmatpush.msra.mxu0 0.0
    %219 = vmatpush.msra.mxu0 0.0
    %220 = vmatpush.msra.mxu0 0.0
    %221 = vmatpush.msra.mxu0 0.0
    %222 = vmatpush.msra.mxu0 0.0
    %223 = vmatpush.msra.mxu0 0.0
    %224 = vmatpush.msra.mxu0 0.0
    %225 = vmatpush.msra.mxu0 0.0
    %226 = vmatpush.msra.mxu0 0.0
    %227 = vmatpush.msra.mxu0 0.0
    %228 = vmatpush.msra.mxu0 0.0
    %229 = vmatpush.msra.mxu0 %v212
    %230 = vmatmul.f32.gmra.mxu0 %v209
    %v231 = vpop.f32.mrf.mxu0
    %v232 = vadd.f32 %v205, %v231
    %233 = vdwg.mxu0
    %v235 = vrot.slane %v232, 2
    %v237 = vadd.f32 %v232, %v235
    %v238 = vxor.u32 %v237, 2147483648
    %v239 = vmul.f32 %v238, 1.442695
    %v240 = vpow.pop %v239
    %v241 = vadd.f32 %v240, 1.0
    %v242 = vrcp.pop %v241
    %v243 = vmul.f32 %v241, %v242
    %v244 = vsub.f32 1.0, %v243
    %v245 = vmul.f32 %v242, %v244
    %v246 = vadd.f32 %v242, %v245
    %vm247 = vweird.f32 %v241
    %vm248 = vweird.f32 %v242
    %vm249 = vmor %vm247, %vm248
    %v250 = vsel %vm249, %v242, %v246
    %v251 = vand.u32 2147483647, %v241
    %vm252 = vcmp.eq.f32.partialorder %v251, 8.507059e+37
    %v253 = vand.u32 %v241, 2147483648
    %v254 = vor.u32 1.1754944e-38, %v253
    %v255 = vsel %vm252, %v254, %v250
    %v256 = vmul.f32 1.0, %v255
    %v257 = vperm.slane %v256, 0
    %v258 = vlaneseq
    %v259 = vshrl.u32 %v258, 7
    %261 = vset.pattern.permute.xlu0 %v259
    %262 = vperm.xlu0 %261, %v257
    %v263 = vpop.permute.xlu0 %262
    %v264 = vlaneseq
    %v265 = vshrl.u32 %v264, 7
    %v266 = vadd.s32 %v265, 8
    %267 = vset.pattern.permute.xlu0 %v266
    %268 = vperm.xlu0 %267, %v257
    %v269 = vpop.permute.xlu0 %268
    %v270 = vlaneseq
    %v271 = vshrl.u32 %v270, 7
    %v272 = vadd.s32 %v271, 16
    %273 = vset.pattern.permute.xlu0 %v272
    %274 = vperm.xlu0 %273, %v257
    %v275 = vpop.permute.xlu0 %274
    %v276 = vlaneseq
    %v277 = vshrl.u32 %v276, 7
    %v278 = vadd.s32 %v277, 24
    %279 = vset.pattern.permute.xlu0 %v278
    %280 = vperm.xlu0 %279, %v257
    %v281 = vpop.permute.xlu0 %280
    %v282 = vperm.slane %v256, 1
    %v283 = vlaneseq
    %v284 = vshrl.u32 %v283, 7
    %286 = vset.pattern.permute.xlu0 %v284
    %287 = vperm.xlu0 %286, %v282
    %v288 = vpop.permute.xlu0 %287
    %v289 = vlaneseq
    %v290 = vshrl.u32 %v289, 7
    %v291 = vadd.s32 %v290, 8
    %292 = vset.pattern.permute.xlu0 %v291
    %293 = vperm.xlu0 %292, %v282
    %v294 = vpop.permute.xlu0 %293
    %v295 = vlaneseq
    %v296 = vshrl.u32 %v295, 7
    %v297 = vadd.s32 %v296, 16
    %298 = vset.pattern.permute.xlu0 %v297
    %299 = vperm.xlu0 %298, %v282
    %v300 = vpop.permute.xlu0 %299
    %v301 = vlaneseq
    %v302 = vshrl.u32 %v301, 7
    %v303 = vadd.s32 %v302, 24
    %304 = vset.pattern.permute.xlu0 %v303
    %305 = vperm.xlu0 %304, %v282
    %v306 = vpop.permute.xlu0 %305
    %v307 = vmul.f32 %v263, %v37
    %v308 = vmul.f32 %v263, %v38
    %v309 = vmul.f32 %v269, %v39
    %v310 = vmul.f32 %v269, %v40
    %v311 = vmul.f32 %v275, %v41
    %v312 = vmul.f32 %v275, %v42
    %v313 = vmul.f32 %v281, %v43
    %v314 = vmul.f32 %v281, %v44
    %v315 = vmul.f32 %v288, %v45
    %v316 = vmul.f32 %v288, %v46
    %v317 = vmul.f32 %v294, %v47
    %v318 = vmul.f32 %v294, %v48
    %v319 = vmul.f32 %v300, %v49
    %v320 = vmul.f32 %v300, %v50
    %v321 = vmul.f32 %v306, %v51
    %v322 = vmul.f32 %v306, %v52
    %323 = vst [vmem:[#allocation5] sm:$0xff] %v307
    %324 = vst [vmem:[#allocation5 + $0x8] sm:$0xff] %v308
    %325 = vst [vmem:[#allocation5 + $0x10] sm:$0xff] %v309
    %326 = vst [vmem:[#allocation5 + $0x18] sm:$0xff] %v310
    %327 = vst [vmem:[#allocation5 + $0x20] sm:$0xff] %v311
    %328 = vst [vmem:[#allocation5 + $0x28] sm:$0xff] %v312
    %329 = vst [vmem:[#allocation5 + $0x30] sm:$0xff] %v313
    %330 = vst [vmem:[#allocation5 + $0x38] sm:$0xff] %v314
    %331 = vst [vmem:[#allocation5 + $0x40] sm:$0xff] %v315
    %332 = vst [vmem:[#allocation5 + $0x48] sm:$0xff] %v316
    %333 = vst [vmem:[#allocation5 + $0x50] sm:$0xff] %v317
    %334 = vst [vmem:[#allocation5 + $0x58] sm:$0xff] %v318
    %335 = vst [vmem:[#allocation5 + $0x60] sm:$0xff] %v319
    %336 = vst [vmem:[#allocation5 + $0x68] sm:$0xff] %v320
    %337 = vst [vmem:[#allocation5 + $0x70] sm:$0xff] %v321
    %338 = vst [vmem:[#allocation5 + $0x78] sm:$0xff] %v322
    // Predicated region
    $region26: #{tpu_custom_call.1} parent=1 // pred_check
      _
    $region27: #{tpu_custom_call.1} parent=1 // pred_check_branch
      %340 = sbr.rel (0) target = $region29
    $region28: #{tpu_custom_call.1} parent=1 // pred_region
      %342 = vsyncadd [#allocation4], 0
      %s343 = sshll.u32 [#allocation5], 4
      %s344 = int_to_ptr.vmem [resolvable:$true] %s343
      %s345 = sshll.u32 %s5, 4
      %s346 = int_to_ptr.hbm [resolvable:$true] %s345
      %351 = dma.vmem_to_hbm [thread:$0]  %s344, 2048, %s346, [#allocation4], 256, 256, 16
    $region29: #{tpu_custom_call.1} parent=1 // pred_fallthru
      _
    // Predicated region
    $region30: #{tpu_custom_call.1} parent=1 // pred_check
      _
    $region31: #{tpu_custom_call.1} parent=1 // pred_check_branch
      %353 = sbr.rel (0) target = $region33
    $region32: #{tpu_custom_call.1} parent=1 // pred_region
      %355 = dma.done [#allocation4], 2048
    $region33: #{tpu_custom_call.1} parent=1 // pred_fallthru
      _
    %356 = vsyncpa [#allocation3], 1
    %357 = vsyncpa [#allocation4], 1

</llo_original>
